<compile_context>
chip_gen: v5e
topology: v5e:2x2
jax: 0.10.0
libtpu: 0.0.40
codegen_flags: <defaults>
</compile_context>

<pallas_src>
import functools
import math

import jax
import jax.numpy as jnp
from jax import lax
from jax.experimental import pallas as pl
from jax.experimental.pallas import tpu as pltpu

_LANE = 128
_SUBLANE = 8
_TARGET_BLOCK_BYTES = 8 * 1024 * 1024    # per-step x block (Pallas double-buffers it)
_VMEM_LIMIT_BYTES = 48 * 1024 * 1024     # < v7x 64 MiB physical; raises v5e/v6e scoped default


def autopad(k, p=None):
    if p is None:
        p = k // 2 if isinstance(k, int) else [v // 2 for v in k]
    return p


# --------------------------- small in-kernel helpers -------------------------- #
def _partial_128(x):
    """(..., m*128) -> (..., 128): lane-aligned slice-adds, pure VALU (no XLU)."""
    m = x.shape[-1] // _LANE
    p = x[..., :_LANE]
    for j in range(1, m):
        p = p + x[..., j * _LANE:(j + 1) * _LANE]
    return p


def _sum_lastdim(x):
    """Sum over the last dim; bulk of the work as VALU slice-adds, one final XLU reduce."""
    n = x.shape[-1]
    k = n // _LANE
    if k >= 2:
        s = jnp.sum(_partial_128(x[..., :k * _LANE]), axis=-1)
        if n % _LANE:
            s = s + jnp.sum(x[..., k * _LANE:], axis=-1)
        return s
    return jnp.sum(x, axis=-1)


# ------------------------ fused pool + 1x1-conv kernel ----------------------- #
def _classify_kernel(x_ref, wt_ref, b_ref, o_ref, acc_ref, *,
                     inv_hw, hw, thw, rem_last, single_pass):
    if single_pass:
        # Whole (TB, C, hw) slab in one block: pool + MXU matmul in one shot.
        x = x_ref[...].astype(jnp.float32)                          # (TB, C, hw)
        s = _sum_lastdim(x) * inv_hw                                # (TB, C) pooled means
        out = jnp.dot(s, wt_ref[...],
                      preferred_element_type=jnp.float32) + b_ref[...]   # MXU
        o_ref[...] = out[:, None, :].astype(o_ref.dtype)            # (TB, 1, c2)
        return

    t = pl.program_id(1)
    n_t = pl.num_programs(1)

    @pl.when(t == 0)
    def _():
        acc_ref[...] = jnp.zeros_like(acc_ref)

    x = x_ref[0].astype(jnp.float32)                                # (C, thw)

    if hw % thw:
        # Only the final tile has out-of-bounds lanes -> mask just there.
        @pl.when(t == n_t - 1)
        def _():
            lane = lax.broadcasted_iota(jnp.int32, x.shape, 1)
            xm = jnp.where(lane < rem_last, x, 0.0)
            acc_ref[...] += _partial_128(xm)

        @pl.when(t < n_t - 1)
        def _():
            acc_ref[...] += _partial_128(x)
    else:
        acc_ref[...] += _partial_128(x)                             # (C, 128) VALU-only

    @pl.when(t == n_t - 1)
    def _():
        # Single cross-lane reduce of the per-lane partials, then MXU matvec.
        s = (jnp.sum(acc_ref[...], axis=-1) * inv_hw)[None, :]      # (1, C)
        out = jnp.dot(s, wt_ref[...],
                      preferred_element_type=jnp.float32) + b_ref[...]
        o_ref[0] = out.astype(o_ref.dtype)


@functools.partial(jax.jit, static_argnames=("block_bytes",))
def _pool_linear(x, wt, bias, *, block_bytes=_TARGET_BLOCK_BYTES):
    """x: (B, C, H, W) any float dtype, wt: (C, c2) f32, bias: (1, c2) f32 -> (B, c2) f32."""
    B, C, H, W = x.shape
    hw = H * W
    c2 = wt.shape[1]
    itemsize = jnp.dtype(x.dtype).itemsize
    x3 = x.reshape(B, C, hw)                                        # contiguous, free

    # Shrink the x-block target if the resident (double-buffered) weight is large.
    wt_bytes = 2 * (C * c2 * 4 + c2 * 4)
    blk = min(block_bytes,
              max(512 * 1024, (_VMEM_LIMIT_BYTES - wt_bytes - (4 << 20)) // 2))

    row_bytes = C * hw * itemsize
    single_pass = row_bytes <= blk
    if single_pass:
        # Common Classify case: whole plane per block; batch several rows per step.
        tb = max(1, min(B, blk // max(1, row_bytes)))
        tb = max(1, min(tb, (4 * 1024 * 1024) // max(1, 4 * c2)))   # bound the out slab
        thw, n_t = hw, 1
        grid = (pl.cdiv(B, tb), 1)
        scratch = pltpu.VMEM((_SUBLANE, _LANE), jnp.float32)        # unused in this path
    else:
        tb = 1
        thw = max(_LANE, (blk // max(1, C * itemsize)) // _LANE * _LANE)
        n_t = pl.cdiv(hw, thw)
        grid = (B, n_t)
        scratch = pltpu.VMEM((C, _LANE), jnp.float32)
    rem_last = hw - (n_t - 1) * thw

    kernel = functools.partial(
        _classify_kernel, inv_hw=1.0 / hw, hw=hw, thw=thw,
        rem_last=rem_last, single_pass=single_pass)

    out = pl.pallas_call(
        kernel,
        grid=grid,
        in_specs=(
            pl.BlockSpec((tb, C, thw), lambda b, t: (b, 0, t)),
            pl.BlockSpec((C, c2), lambda b, t: (0, 0)),
            pl.BlockSpec((1, c2), lambda b, t: (0, 0)),
        ),
        out_specs=pl.BlockSpec((tb, 1, c2), lambda b, t: (b, 0, 0)),
        out_shape=jax.ShapeDtypeStruct((B, 1, c2), jnp.float32),
        scratch_shapes=[scratch],
        compiler_params=pltpu.CompilerParams(
            dimension_semantics=("parallel", "arbitrary"),
            vmem_limit_bytes=_VMEM_LIMIT_BYTES),
    )(x3, wt, bias)
    return out[:, 0, :]                                             # (B, c2)


# ---------------------------------- module ---------------------------------- #
class Classify:
    """Pallas port of yolov5face Classify: AdaptiveAvgPool2d(1) -> Conv2d(k) -> Flatten."""

    def __init__(self, c1, c2, k=1, s=1, p=None, g=1, *, key=None):
        if g != 1:
            raise NotImplementedError("groups > 1")  # TODO(synk): grouped 1x1 conv not implemented
        if k % 2 == 0:
            raise NotImplementedError("even k")      # TODO(synk): even-k conv on 1x1 input not implemented
        if p is not None and p != k // 2:
            raise NotImplementedError("non-default padding changes the conv output on a 1x1 input")
        # stride is irrelevant: with pad=k//2 and a 1x1 pooled input the output is 1x1 for any s.
        del s
        self.c1, self.c2, self.k = c1, c2, k
        key = jax.random.PRNGKey(0) if key is None else key
        kw, kb = jax.random.split(key)
        fan_in = c1 * k * k
        bound = 1.0 / math.sqrt(fan_in)              # PyTorch Conv2d default init bounds
        self.weight = jax.random.uniform(kw, (c2, c1, k, k), jnp.float32, -bound, bound)
        self.bias = jax.random.uniform(kb, (c2,), jnp.float32, -bound, bound)
        # Only the centre tap ever multiplies the (zero-padded) 1x1 pooled input.
        self.w2d = self.weight[:, :, k // 2, k // 2]           # (c2, c1)
        self._wt = jnp.transpose(self.w2d)                     # (c1, c2): channel-major, lanes = c2
        self._b_row = self.bias.reshape(1, c2)

    def __call__(self, x):
        xs = list(x) if isinstance(x, (list, tuple)) else [x]
        out, off = None, 0
        for i, y in enumerate(xs):
            ci = y.shape[1]
            wt_i = self._wt[off:off + ci]                      # (ci, c2) slice of the 1x1 weight
            b_i = self._b_row if i == 0 else jnp.zeros_like(self._b_row)
            part = _pool_linear(y, wt_i, b_i)
            out = part if out is None else out + part
            off += ci
        assert off == self.c1, "sum of input channels must equal c1"
        return out                                             # (B, c2), already flat


# ----------------------------------- demo ----------------------------------- #
if __name__ == "__main__":
    key = jax.random.PRNGKey(0)
    B, C1, C2, H, W = 2, 32, 8, 16, 16
    kx, km = jax.random.split(key)
    x = jax.random.normal(kx, (B, C1, H, W), jnp.float32)

    model = Classify(C1, C2, k=1, key=km)

    # single-tensor input (single-pass path: whole plane per block, batched rows)
    out = model(x)
    jax.block_until_ready(out)
    assert out.shape == (B, C2)
    ref = x.mean(axis=(2, 3)) @ model.w2d.T + model.bias
    assert jnp.allclose(out, ref, atol=2e-4, rtol=1e-3), "mismatch vs reference"

    # list input (channel concat after pooling), handled via conv linearity
    out_list = model([x[:, :20], x[:, 20:]])
    jax.block_until_ready(out_list)
    assert jnp.allclose(out_list, ref, atol=2e-4, rtol=1e-3), "list-input mismatch"

    # tiled path with a ragged tail tile (force a tiny block so hw=324 -> 3 tiles of 128)
    H2, W2 = 18, 18
    x2 = jax.random.normal(jax.random.PRNGKey(1), (B, C1, H2, W2), jnp.float32)
    out2 = _pool_linear(x2, model._wt, model._b_row, block_bytes=C1 * 128 * 4)
    jax.block_until_ready(out2)
    ref2 = x2.mean(axis=(2, 3)) @ model.w2d.T + model.bias
    assert jnp.allclose(out2, ref2, atol=2e-4, rtol=1e-3), "tiled/ragged-path mismatch"

    # bf16 activations (halved HBM traffic), f32 accumulation inside the kernel
    xb = x.astype(jnp.bfloat16)
    out_bf = model(xb)
    jax.block_until_ready(out_bf)
    ref_bf = xb.astype(jnp.float32).mean(axis=(2, 3)) @ model.w2d.T + model.bias
    assert jnp.allclose(out_bf, ref_bf, atol=1e-2, rtol=1e-2), "bf16-input mismatch"

    print("KERNEL_OK")
</pallas_src>

<mosaic_0001>
module attributes {stable_mosaic.version = 11 : i64} {
  func.func @_classify_kernel(%arg0: i32, %arg1: i32, %arg2: memref<2x32x256xf32, #tpu.memory_space<vmem>>, %arg3: memref<32x8xf32, #tpu.memory_space<vmem>>, %arg4: memref<1x8xf32, #tpu.memory_space<vmem>>, %arg5: memref<2x1x8xf32, #tpu.memory_space<vmem>>, %arg6: memref<8x128xf32, #tpu.memory_space<vmem>>) attributes {dimension_semantics = [#tpu.dimension_semantics<parallel>, #tpu.dimension_semantics<arbitrary>], iteration_bounds = array<i64: 1, 1>, scalar_prefetch = 0 : i64, scratch_operands = 1 : i64, tpu.core_type = #tpu.core_type<tc>, window_params = [{transform_indices = @transform_0, window_bounds = array<i64: 2, 32, 256>}, {pipeline_mode = #tpu.pipeline_mode<synchronous>, transform_indices = @transform_1, window_bounds = array<i64: 32, 8>}, {pipeline_mode = #tpu.pipeline_mode<synchronous>, transform_indices = @transform_2, window_bounds = array<i64: 1, 8>}, {transform_indices = @transform_3, window_bounds = array<i64: 2, 1, 8>}]} {
    %c0 = arith.constant 0 : index
    %c0_0 = arith.constant 0 : index
    %c0_1 = arith.constant 0 : index
    %0 = vector.load %arg2[%c0, %c0_0, %c0_1] : memref<2x32x256xf32, #tpu.memory_space<vmem>>, vector<2x32x256xf32>
    %1 = vector.extract_strided_slice %0 {offsets = [0, 0, 0], sizes = [2, 32, 128], strides = [1, 1, 1]} : vector<2x32x256xf32> to vector<2x32x128xf32>
    %2 = vector.extract_strided_slice %0 {offsets = [0, 0, 128], sizes = [2, 32, 128], strides = [1, 1, 1]} : vector<2x32x256xf32> to vector<2x32x128xf32>
    %3 = arith.addf %1, %2 : vector<2x32x128xf32>
    %cst = arith.constant dense<0.000000e+00> : vector<2x32xf32>
    %4 = vector.multi_reduction <add>, %3, %cst [2] : vector<2x32x128xf32> to vector<2x32xf32>
    %cst_2 = arith.constant 3.906250e-03 : f32
    %5 = vector.broadcast %cst_2 : f32 to vector<2x32xf32>
    %6 = arith.mulf %4, %5 : vector<2x32xf32>
    %c0_3 = arith.constant 0 : index
    %c0_4 = arith.constant 0 : index
    %7 = vector.load %arg3[%c0_3, %c0_4] : memref<32x8xf32, #tpu.memory_space<vmem>>, vector<32x8xf32>
    %cst_5 = arith.constant dense<0.000000e+00> : vector<2x8xf32>
    %8 = tpu.matmul %6, %7, %cst_5 {dimension_numbers = #tpu.dot_dimension_numbers<[1], [0], [0], [1], [0, 0, 1, 1], [], []>} : vector<2x32xf32>, vector<32x8xf32>, vector<2x8xf32> -> vector<2x8xf32>
    %c0_6 = arith.constant 0 : index
    %c0_7 = arith.constant 0 : index
    %9 = vector.load %arg4[%c0_6, %c0_7] : memref<1x8xf32, #tpu.memory_space<vmem>>, vector<1x8xf32>
    %10 = vector.broadcast %9 : vector<1x8xf32> to vector<2x8xf32>
    %11 = arith.addf %8, %10 : vector<2x8xf32>
    %12 = vector.shape_cast %11 : vector<2x8xf32> to vector<2x1x8xf32>
    %c0_8 = arith.constant 0 : index
    %c0_9 = arith.constant 0 : index
    %c0_10 = arith.constant 0 : index
    %13 = vector.load %arg5[%c0_8, %c0_9, %c0_10] : memref<2x1x8xf32, #tpu.memory_space<vmem>>, vector<2x1x8xf32>
    tpu.vector_store %arg5[%c0_8, %c0_9, %c0_10], %12 {strides = array<i32>} : memref<2x1x8xf32, #tpu.memory_space<vmem>>, vector<2x1x8xf32>,
    return
  }
  func.func @transform_0(%arg0: i32, %arg1: i32) -> (i32, i32, i32) {
    %c0_i32 = arith.constant 0 : i32
    %c0_i32_0 = arith.constant 0 : i32
    return %arg0, %c0_i32, %arg1 : i32, i32, i32
  }
  func.func @transform_1(%arg0: i32, %arg1: i32) -> (i32, i32) {
    %c0_i32 = arith.constant 0 : i32
    %c0_i32_0 = arith.constant 0 : i32
    %c0_i32_1 = arith.constant 0 : i32
    return %c0_i32, %c0_i32_0 : i32, i32
  }
  func.func @transform_2(%arg0: i32, %arg1: i32) -> (i32, i32) {
    %c0_i32 = arith.constant 0 : i32
    %c0_i32_0 = arith.constant 0 : i32
    %c0_i32_1 = arith.constant 0 : i32
    return %c0_i32, %c0_i32_0 : i32, i32
  }
  func.func @transform_3(%arg0: i32, %arg1: i32) -> (i32, i32, i32) {
    %c0_i32 = arith.constant 0 : i32
    %c0_i32_0 = arith.constant 0 : i32
    %c0_i32_1 = arith.constant 0 : i32
    return %arg0, %c0_i32, %c0_i32_0 : i32, i32, i32
  }
}

</mosaic_0001>

<llo_original>
// kernel: _pool_linear.1
$region0: #{_pool_linear.1}
  #allocation0 [shape = 'u32[]', space=smem, size = 0x4, offset = 0x4, fixed_abs, tag = 'smem constant byte address 0x4 - core index']
  #allocation1 [shape = 'u32[72,128]{1,0:T(1,128)}', space=vmem, size = 0x9000, scoped, tag = 'internal scratch']
  #allocation2 [shape = 'f32[8,128]{1,0:T(8,128)}', space=vmem, size = 0x1000, scoped, tag = 'scratch operand']
  %s0 = inlined_call_operand.vmem [shape: f32[2,32,256], index: 0, kind: input, shape index: {}]
  %s1 = inlined_call_operand.vmem [shape: f32[32,8], index: 1, kind: input, shape index: {}]
  %s2 = inlined_call_operand.vmem [shape: f32[1,8], index: 2, kind: input, shape index: {}]
  %s3 = inlined_call_operand.hbm [shape: f32[2,1,8], index: 3, kind: output, shape index: {}]
  %s4 = sld [smem:[#allocation0]]
  $region22: #{_pool_linear.1} parent=0
    _
  %s6 = ssub.s32 1, %s4
  %s7 = scalar_select 0, %s6, %s4
  $region1: #{_pool_linear.1} parent=0
    #allocation3 [shape = 'u8[1024]{0}', space=vmem, size = 0x400, scoped, tag = 'output window, operand 0, single buffered']
    #allocation4 [shape = 's32[1]{0}', space=sflag, size = 0x4, scoped, tag = 'scoped memory for _pool_linear.1']
    %8 = vsyncpa [#allocation4], 0
    // Predicated region
    $region2: #{_pool_linear.1} parent=1 // pred_check
      _
    $region3: #{_pool_linear.1} parent=1 // pred_check_branch
      %10 = sbr.rel (0) target = $region5
    $region4: #{_pool_linear.1} parent=1 // pred_region
      _
    $region5: #{_pool_linear.1} parent=1 // pred_fallthru
      _
    // Predicated region
    $region6: #{_pool_linear.1} parent=1 // pred_check
      _
    $region7: #{_pool_linear.1} parent=1 // pred_check_branch
      %12 = sbr.rel (0) target = $region9
    $region8: #{_pool_linear.1} parent=1 // pred_region
      _
    $region9: #{_pool_linear.1} parent=1 // pred_fallthru
      _
    // Predicated region
    $region10: #{_pool_linear.1} parent=1 // pred_check
      _
    $region11: #{_pool_linear.1} parent=1 // pred_check_branch
      %14 = sbr.rel (0) target = $region13
    $region12: #{_pool_linear.1} parent=1 // pred_region
      _
    $region13: #{_pool_linear.1} parent=1 // pred_fallthru
      _
    %v15 = vld [vmem:[%s0] sm:$0xff]
    %v16 = vld [vmem:[%s0 + $0x8] sm:$0xff]
    %v17 = vld [vmem:[%s0 + $0x10] sm:$0xff]
    %v18 = vld [vmem:[%s0 + $0x18] sm:$0xff]
    %v19 = vld [vmem:[%s0 + $0x20] sm:$0xff]
    %v20 = vld [vmem:[%s0 + $0x28] sm:$0xff]
    %v21 = vld [vmem:[%s0 + $0x30] sm:$0xff]
    %v22 = vld [vmem:[%s0 + $0x38] sm:$0xff]
    %v23 = vld [vmem:[%s0 + $0x40] sm:$0xff]
    %v24 = vld [vmem:[%s0 + $0x48] sm:$0xff]
    %v25 = vld [vmem:[%s0 + $0x50] sm:$0xff]
    %v26 = vld [vmem:[%s0 + $0x58] sm:$0xff]
    %v27 = vld [vmem:[%s0 + $0x60] sm:$0xff]
    %v28 = vld [vmem:[%s0 + $0x68] sm:$0xff]
    %v29 = vld [vmem:[%s0 + $0x70] sm:$0xff]
    %v30 = vld [vmem:[%s0 + $0x78] sm:$0xff]
    %v31 = vadd.f32 %v15, %v16
    %v32 = vadd.f32 %v17, %v18
    %v33 = vadd.f32 %v19, %v20
    %v34 = vadd.f32 %v21, %v22
    %v35 = vadd.f32 %v23, %v24
    %v36 = vadd.f32 %v25, %v26
    %v37 = vadd.f32 %v27, %v28
    %v38 = vadd.f32 %v29, %v30
    %39 = vadd.xlane.f32.xlu0 %v31
    %v40 = vpop.xlane.xlu0 %39
    %41 = vadd.xlane.f32.xlu0 %v32
    %v42 = vpop.xlane.xlu0 %41
    %43 = vadd.xlane.f32.xlu0 %v33
    %v44 = vpop.xlane.xlu0 %43
    %45 = vadd.xlane.f32.xlu0 %v34
    %v46 = vpop.xlane.xlu0 %45
    %47 = vadd.xlane.f32.xlu0 %v35
    %v48 = vpop.xlane.xlu0 %47
    %49 = vadd.xlane.f32.xlu0 %v36
    %v50 = vpop.xlane.xlu0 %49
    %51 = vadd.xlane.f32.xlu0 %v37
    %v52 = vpop.xlane.xlu0 %51
    %53 = vadd.xlane.f32.xlu0 %v38
    %v54 = vpop.xlane.xlu0 %53
    %v55 = vmul.f32 %v40, 0.00390625
    %v56 = vmul.f32 %v42, 0.00390625
    %v57 = vmul.f32 %v44, 0.00390625
    %v58 = vmul.f32 %v46, 0.00390625
    %v59 = vmul.f32 %v48, 0.00390625
    %v60 = vmul.f32 %v50, 0.00390625
    %v61 = vmul.f32 %v52, 0.00390625
    %v62 = vmul.f32 %v54, 0.00390625
    %v63 = vld [vmem:[%s1] sm:$0xff]
    %v64 = vld [vmem:[%s1 + $0x8] sm:$0xff]
    %v65 = vld [vmem:[%s1 + $0x10] sm:$0xff]
    %v66 = vld [vmem:[%s1 + $0x18] sm:$0xff]
    %v67 = vld [vmem:[%s2] sm:$0x1]
    %v69 = vperm.slane %v67, 0
    %v79 = vlaneseq
    %v80 = vand.u32 %v79, 127
    %v81 = vperm.slane %v55, %v80
    %v82 = vadd.s32 %v80, 4294967288
    %v83 = vperm.slane %v56, %v82
    %vm84 = vcmask 130112
    %v85 = vsel %vm84, %v83, %v81
    %v86 = vadd.s32 %v80, 4294967280
    %v87 = vperm.slane %v57, %v86
    %vm88 = vcmask 195712
    %v89 = vsel %vm88, %v87, %v85
    %v90 = vadd.s32 %v80, 4294967272
    %v91 = vperm.slane %v58, %v90
    %vm92 = vcmask 261312
    %v93 = vsel %vm92, %v91, %v89
    %v94 = vperm.slane %v59, %v80
    %v95 = vperm.slane %v60, %v82
    %v96 = vsel %vm84, %v95, %v94
    %v97 = vperm.slane %v61, %v86
    %v98 = vsel %vm88, %v97, %v96
    %v99 = vperm.slane %v62, %v90
    %v100 = vsel %vm92, %v99, %v98
    %vm101 = vcmask 1041409
    %v102 = vsel %vm101, %v100, %v93
    %vm103 = vcmask 261120
    %v104 = vsel %vm103, %v102, 0
    %106 = vmatpush.msra.mxu0 0.0
    %107 = vmatpush.msra.mxu0 0.0
    %108 = vmatpush.msra.mxu0 0.0
    %109 = vmatpush.msra.mxu0 0.0
    %110 = vmatpush.msra.mxu0 0.0
    %111 = vmatpush.msra.mxu0 0.0
    %112 = vmatpush.msra.mxu0 0.0
    %113 = vmatpush.msra.mxu0 0.0
    %114 = vmatpush.msra.mxu0 0.0
    %115 = vmatpush.msra.mxu0 0.0
    %116 = vmatpush.msra.mxu0 0.0
    %117 = vmatpush.msra.mxu0 0.0
    %118 = vmatpush.msra.mxu0 %v66
    %119 = vmatpush.msra.mxu0 %v65
    %120 = vmatpush.msra.mxu0 %v64
    %121 = vmatpush.msra.mxu0 %v63
    %122 = vmatmul.f32.gmra.mxu0 %v104
    %v123 = vpop.f32.mrf.mxu0
    %v124 = vadd.f32 %v69, %v123
    %125 = vdwg.mxu0
    %v127 = vrot.slane %v124, 1
    %vm129 = vcmask 57344
    %130 = vst.msk [vmem:[#allocation3] sm:$0x1] %vm129, %v124
    %131 = vst.msk [vmem:[#allocation3 + $0x1] sm:$0x1] %vm129, %v127
    // Predicated region
    $region14: #{_pool_linear.1} parent=1 // pred_check
      _
    $region15: #{_pool_linear.1} parent=1 // pred_check_branch
      %133 = sbr.rel (0) target = $region17
    $region16: #{_pool_linear.1} parent=1 // pred_region
      %135 = vsyncadd [#allocation4], 0
      %s136 = sshll.u32 [#allocation3], 4
      %s137 = int_to_ptr.vmem [resolvable:$true] %s136
      %s138 = sshll.u32 %s3, 4
      %s139 = int_to_ptr.hbm [resolvable:$true] %s138
      %144 = dma.vmem_to_hbm [thread:$0]  %s137, 32, %s139, [#allocation4], 16, 16, 1
    $region17: #{_pool_linear.1} parent=1 // pred_fallthru
      _
    // Predicated region
    $region18: #{_pool_linear.1} parent=1 // pred_check
      _
    $region19: #{_pool_linear.1} parent=1 // pred_check_branch
      %146 = sbr.rel (0) target = $region21
    $region20: #{_pool_linear.1} parent=1 // pred_region
      %148 = dma.done [#allocation4], 32
    $region21: #{_pool_linear.1} parent=1 // pred_fallthru
      _
    %149 = vsyncpa [#allocation4], 1

</llo_original>
